<compile_context>
chip_gen: v7x
topology: tpu7x:2x2x1
jax: 0.10.0
libtpu: 0.0.40
codegen_flags: <defaults>
</compile_context>

<pallas_src>
import jax
import jax.numpy as jnp
from jax import lax
from jax.experimental import pallas as pl
from jax.experimental.pallas import tpu as pltpu


def attention_kernel(h_ref, lens_ref, w1_ref, b1_ref, w2_ref,
                     pos_sel_ref, batch_sel_ref, o_ref):
    # h_ref:        (BB*T, H)  hidden rows of this batch block (f32 or bf16)
    # lens_ref:     (BB, 1)    int32
    # w1_ref:       (H, H2)    bf16  (resident, single-buffered)
    # b1_ref:       (1, H2)    epilogue dtype (resident)
    # w2_ref:       (1, H2)    epilogue dtype (resident)
    # pos_sel_ref:  (BB*T, T)  bf16 0/1, pos_sel[r, j]   = 1 iff r % T == j
    # batch_sel_ref:(BB, BB*T) bf16 0/1, batch_sel[b, r] = 1 iff r // T == b
    # o_ref:        (BB, T)    f32 attention weights, T on lanes
    bb, t = o_ref.shape

    # ---- layer 1: hidden @ W1 on the MXU, bf16 operands, f32 accumulate ------
    h = h_ref[...]
    if h.dtype != jnp.bfloat16:          # no-op when the producer emits bf16
        h = h.astype(jnp.bfloat16)
    acc = jnp.dot(h, w1_ref[...], preferred_element_type=jnp.float32)  # (BB*T, H2)

    # ---- epilogue: tanh + (H2 -> 1) projection as VPU multiply + lane reduce -
    # Epilogue dtype comes from b1/w2 (f32 by default; bf16 on v6e/v7x halves
    # EUP pushes for tanh and vreg pressure on the lane-padded a1 tile).
    ep = b1_ref.dtype
    a1 = jnp.tanh(acc.astype(ep) + b1_ref[...])                        # (BB*T, H2)
    logit_col = jnp.sum((a1 * w2_ref[...]).astype(jnp.float32),
                        axis=-1, keepdims=True)                        # (BB*T, 1) f32

    # ---- relayout (BB*T, 1) -> (BB, T): put T on the lane axis ---------------
    # 0/1 selector decomposition (exact: one nonzero term per output element).
    # Selectors are bf16 (exact 0/1); the scatter and the selection matmul stay
    # in f32 to keep logits bit-tight vs the reference.
    scatter = logit_col * pos_sel_ref[...]                             # (BB*T, T) f32
    logits = jnp.dot(batch_sel_ref[...].astype(jnp.float32), scatter,
                     preferred_element_type=jnp.float32)               # (BB, T)

    # ---- masked softmax along T (lane reduce) --------------------------------
    # NOTE: lens[i] == 0 (fully masked row) yields NaN, same as the PyTorch
    # reference (whole row is -inf).
    pos = lax.broadcasted_iota(jnp.int32, (bb, t), 1)
    masked = jnp.where(pos >= lens_ref[...], -jnp.inf, logits)

    m = jnp.max(masked, axis=-1, keepdims=True)
    e = jnp.exp(masked - m)
    s = jnp.sum(e, axis=-1, keepdims=True)
    # pl.reciprocal(approx=True) is a free EUP win if ~1e-4 softmax error is OK;
    # keep the exact path so the numeric check stays tight.
    o_ref[...] = (e * pl.reciprocal(s, approx=False)).astype(o_ref.dtype)


def _vmem_budget_bytes():
    """Generation-aware per-step VMEM budget (v7x has 64 MiB vs 128 MiB)."""
    try:
        kind = jax.devices()[0].device_kind.lower()
    except Exception:
        kind = ""
    return (16 << 20) if "v7" in kind else (28 << 20)


def _choose_batch_block(B, T, H, H2, hidden_itemsize, *, target_rows=512,
                        vmem_budget_bytes=28 << 20):
    """Pick the per-grid-step batch block `bb`.

    bb must divide B and be a multiple of 8 (layout-legal second-minor block
    dim) or equal B.  Preference order:
      1. per-step VMEM footprint within the (generation-aware) budget,
      2. at least 2 grid steps (v7x megacore sharding + DMA/compute overlap),
      3. the smallest bb reaching bb*T >= target_rows (roofline-sized steps
         without over-growing the O(bb*T*T) relayout scatter).
    """
    legal = [d for d in range(8, B, 8) if B % d == 0]
    legal.append(B)  # whole-batch block is always layout-legal

    def step_vmem_bytes(bb):
        rows = bb * T
        return (2 * rows * H * hidden_itemsize   # double-buffered hidden block
                + rows * H2 * 4                  # a1 temp (f32 upper bound)
                + rows * T * 4                   # f32 scatter temp
                + rows * T * 2 + bb * rows * 2   # bf16 selectors (single-buffered)
                + 2 * bb * T * 4                 # double-buffered output block
                + H * H2 * 2 + 4 * H2 * 4)       # resident weights

    fits = [bb for bb in legal if step_vmem_bytes(bb) <= vmem_budget_bytes]
    if not fits:
        # TODO(synk): pad B (or use a cdiv grid with masked tail) so a huge
        # single-block fallback can never blow the VMEM budget at prod sizes.
        fits = [min(legal)]
    multi = [bb for bb in fits if B // bb >= 2] or fits
    big = [bb for bb in multi if bb * T >= target_rows]
    bb = min(big) if big else max(multi)
    return bb, step_vmem_bytes(bb)


def attention_forward(hidden, lens, w1, b1, w2, *,
                      epilogue_dtype=jnp.float32,
                      target_rows=512,
                      vmem_budget_bytes=None):
    """hidden: (B, T, H) f32 or bf16, lens: (B,), w1: (H, H//2), b1: (H//2,), w2: (H//2,)."""
    B, T, H = hidden.shape
    H2 = w1.shape[1]

    if vmem_budget_bytes is None:
        vmem_budget_bytes = _vmem_budget_bytes()

    bb, step_vmem = _choose_batch_block(
        B, T, H, H2, jnp.dtype(hidden.dtype).itemsize,
        target_rows=target_rows, vmem_budget_bytes=vmem_budget_bytes)
    rows = bb * T
    grid = (B // bb,)

    # Wrapper-side layout plumbing (all free / tiny).  NOTE: no dtype cast of
    # `hidden` here - a standalone wrapper cast would cost an extra HBM pass.
    hidden_2d = hidden.reshape(B * T, H)                 # contiguous relabel
    lens_col = lens.reshape(B, 1).astype(jnp.int32)      # vectorized mask operand
    w1_bf16 = w1.astype(jnp.bfloat16)                    # MXU operand dtype
    b1_row = b1.reshape(1, H2).astype(epilogue_dtype)
    w2_row = w2.reshape(1, H2).astype(epilogue_dtype)    # w2 on lanes

    # Constant 0/1 relayout matrices (bf16 is exact for 0/1); DMA'd once per
    # launch thanks to the constant index maps + single buffering.
    r = jnp.arange(rows)
    pos_sel = (r[:, None] % T == jnp.arange(T)[None, :]).astype(jnp.bfloat16)       # (rows, T)
    batch_sel = (jnp.arange(bb)[:, None] == (r[None, :] // T)).astype(jnp.bfloat16)  # (bb, rows)

    # Raise the scoped-VMEM limit only when production-sized blocks need it
    # (v5e default 16 MiB, v6e/v7x default 32 MiB); cap well under v7x's 64 MiB.
    vmem_limit = None
    if step_vmem > (12 << 20):
        vmem_limit = int(min(max(2 * step_vmem, 32 << 20), 48 << 20))

    # Single-buffer the constant-index (resident) inputs when supported.
    buffered = getattr(pl, "Buffered", None)
    resident_kwargs = {"pipeline_mode": buffered(1)} if buffered is not None else {}

    def build(res_kwargs):
        return pl.pallas_call(
            attention_kernel,
            out_shape=jax.ShapeDtypeStruct((B, T), jnp.float32),
            grid=grid,
            in_specs=[
                pl.BlockSpec((rows, H), lambda i: (i, 0)),                 # hidden block
                pl.BlockSpec((bb, 1), lambda i: (i, 0)),                   # lens column
                pl.BlockSpec((H, H2), lambda i: (0, 0), **res_kwargs),     # W1 (resident)
                pl.BlockSpec((1, H2), lambda i: (0, 0), **res_kwargs),     # b1 (resident)
                pl.BlockSpec((1, H2), lambda i: (0, 0), **res_kwargs),     # w2 (resident)
                pl.BlockSpec((rows, T), lambda i: (0, 0), **res_kwargs),   # pos_sel
                pl.BlockSpec((bb, rows), lambda i: (0, 0), **res_kwargs),  # batch_sel
            ],
            # Lane-dense (bb, T) store.  For production T < 128 consider packing
            # several batch rows per 128-lane output row (see TODO at top).
            out_specs=pl.BlockSpec((bb, T), lambda i: (i, 0)),
            compiler_params=pltpu.CompilerParams(
                dimension_semantics=("parallel",),   # batch blocks are independent
                vmem_limit_bytes=vmem_limit,
            ),
        )

    args = (hidden_2d, lens_col, w1_bf16, b1_row, w2_row, pos_sel, batch_sel)
    try:
        return build(resident_kwargs)(*args)
    except Exception:
        if not resident_kwargs:
            raise
        # Fallback for environments where Buffered(1) single-buffering is not
        # accepted: default double-buffered constant blocks (correctness same).
        return build({})(*args)


def attention_reference(hidden, lens, w1, b1, w2, *, mxu_dtype=jnp.float32):
    """Pure-JAX reference matching the PyTorch module semantics."""
    h = hidden.astype(mxu_dtype)
    w1c = w1.astype(mxu_dtype)
    a1 = jnp.tanh(
        jnp.einsum("bth,hk->btk", h, w1c, preferred_element_type=jnp.float32)
        + b1.reshape(1, 1, -1)
    )
    logits = jnp.einsum("btk,k->bt", a1, w2.reshape(-1))
    T = hidden.shape[1]
    mask = jnp.arange(T)[None, :] >= lens[:, None]
    logits = jnp.where(mask, -jnp.inf, logits)
    return jax.nn.softmax(logits, axis=-1)


if __name__ == "__main__":
    B, T, H = 2, 8, 32
    H2 = H // 2

    key = jax.random.PRNGKey(0)
    k_h, k_w1, k_b1, k_w2 = jax.random.split(key, 4)

    hidden = jax.random.normal(k_h, (B, T, H), dtype=jnp.float32)
    # Synthetic parameters with nn.Linear(H, H//2) / nn.Linear(H//2, 1, bias=False)
    # shapes, stored pre-transposed for x @ W.
    w1 = jax.random.normal(k_w1, (H, H2), dtype=jnp.float32) * (1.0 / jnp.sqrt(H))
    b1 = jax.random.normal(k_b1, (H2,), dtype=jnp.float32) * 0.1
    w2 = jax.random.normal(k_w2, (H2,), dtype=jnp.float32) * (1.0 / jnp.sqrt(H2))

    lens = jnp.array([5, 8], dtype=jnp.int32)

    # ---- run 1: f32 hidden (module's native dtype), f32 epilogue -------------
    attn = jax.block_until_ready(attention_forward(hidden, lens, w1, b1, w2))

    ref_bf16 = attention_reference(hidden, lens, w1, b1, w2, mxu_dtype=jnp.bfloat16)
    ref_f32 = attention_reference(hidden, lens, w1, b1, w2, mxu_dtype=jnp.float32)

    assert attn.shape == (B, T)
    assert bool(jnp.all(jnp.isfinite(attn)))
    assert jnp.allclose(jnp.sum(attn, axis=-1), 1.0, atol=1e-5)
    assert jnp.allclose(attn, ref_bf16, atol=1e-4, rtol=1e-4), "mismatch vs bf16-matched reference"
    assert jnp.allclose(attn, ref_f32, atol=5e-3, rtol=5e-2), "mismatch vs f32 reference"

    # ---- run 2: bf16 hidden straight from a bf16 producer (no wrapper cast) --
    hidden_bf16 = hidden.astype(jnp.bfloat16)   # stands in for an upstream bf16 producer
    attn_b = jax.block_until_ready(attention_forward(hidden_bf16, lens, w1, b1, w2))
    ref_b = attention_reference(hidden_bf16, lens, w1, b1, w2, mxu_dtype=jnp.bfloat16)
    assert jnp.allclose(attn_b, ref_b, atol=1e-4, rtol=1e-4), "mismatch (bf16 hidden path)"

    # ---- run 3 (v6e/v7x only): bf16 tanh/projection epilogue -----------------
    try:
        kind = jax.devices()[0].device_kind.lower()
    except Exception:
        kind = ""
    if ("v6" in kind) or ("v7" in kind):
        attn_ep = jax.block_until_ready(
            attention_forward(hidden, lens, w1, b1, w2, epilogue_dtype=jnp.bfloat16))
        assert jnp.allclose(jnp.sum(attn_ep, axis=-1), 1.0, atol=1e-3)
        assert jnp.allclose(attn_ep, ref_f32, atol=2e-2, rtol=5e-2), "mismatch (bf16 epilogue)"

    print("KERNEL_OK")
</pallas_src>

<mosaic_0001>
module attributes {stable_mosaic.version = 11 : i64} {
  func.func @attention_kernel(%arg0: i32, %arg1: memref<16x32xf32, #tpu.memory_space<vmem>>, %arg2: memref<2x1xi32, #tpu.memory_space<vmem>>, %arg3: memref<32x16xbf16, #tpu.memory_space<vmem>>, %arg4: memref<1x16xf32, #tpu.memory_space<vmem>>, %arg5: memref<1x16xf32, #tpu.memory_space<vmem>>, %arg6: memref<16x8xbf16, #tpu.memory_space<vmem>>, %arg7: memref<2x16xbf16, #tpu.memory_space<vmem>>, %arg8: memref<2x8xf32, #tpu.memory_space<vmem>>) attributes {dimension_semantics = [#tpu.dimension_semantics<parallel>], iteration_bounds = array<i64: 1>, scalar_prefetch = 0 : i64, scratch_operands = 0 : i64, tpu.core_type = #tpu.core_type<tc>, window_params = [{transform_indices = @transform_0, window_bounds = array<i64: 16, 32>}, {transform_indices = @transform_1, window_bounds = array<i64: 2, 1>}, {pipeline_mode = #tpu.pipeline_mode<synchronous>, transform_indices = @transform_2, window_bounds = array<i64: 32, 16>}, {pipeline_mode = #tpu.pipeline_mode<synchronous>, transform_indices = @transform_3, window_bounds = array<i64: 1, 16>}, {pipeline_mode = #tpu.pipeline_mode<synchronous>, transform_indices = @transform_4, window_bounds = array<i64: 1, 16>}, {pipeline_mode = #tpu.pipeline_mode<synchronous>, transform_indices = @transform_5, window_bounds = array<i64: 16, 8>}, {pipeline_mode = #tpu.pipeline_mode<synchronous>, transform_indices = @transform_6, window_bounds = array<i64: 2, 16>}, {transform_indices = @transform_7, window_bounds = array<i64: 2, 8>}]} {
    %c0 = arith.constant 0 : index
    %c0_0 = arith.constant 0 : index
    %0 = vector.load %arg1[%c0, %c0_0] : memref<16x32xf32, #tpu.memory_space<vmem>>, vector<16x32xf32>
    %1 = arith.truncf %0 : vector<16x32xf32> to vector<16x32xbf16>
    %c0_1 = arith.constant 0 : index
    %c0_2 = arith.constant 0 : index
    %2 = vector.load %arg3[%c0_1, %c0_2] : memref<32x16xbf16, #tpu.memory_space<vmem>>, vector<32x16xbf16>
    %cst = arith.constant dense<0.000000e+00> : vector<16x16xf32>
    %3 = tpu.matmul %1, %2, %cst {dimension_numbers = #tpu.dot_dimension_numbers<[1], [0], [0], [1], [0, 0, 1, 1], [], []>} : vector<16x32xbf16>, vector<32x16xbf16>, vector<16x16xf32> -> vector<16x16xf32>
    %c0_3 = arith.constant 0 : index
    %c0_4 = arith.constant 0 : index
    %4 = vector.load %arg4[%c0_3, %c0_4] : memref<1x16xf32, #tpu.memory_space<vmem>>, vector<1x16xf32>
    %5 = vector.broadcast %4 : vector<1x16xf32> to vector<16x16xf32>
    %6 = arith.addf %3, %5 : vector<16x16xf32>
    %7 = math.tanh %6 : vector<16x16xf32>
    %c0_5 = arith.constant 0 : index
    %c0_6 = arith.constant 0 : index
    %8 = vector.load %arg5[%c0_5, %c0_6] : memref<1x16xf32, #tpu.memory_space<vmem>>, vector<1x16xf32>
    %9 = vector.broadcast %8 : vector<1x16xf32> to vector<16x16xf32>
    %10 = arith.mulf %7, %9 : vector<16x16xf32>
    %cst_7 = arith.constant dense<0.000000e+00> : vector<16xf32>
    %11 = vector.multi_reduction <add>, %10, %cst_7 [1] : vector<16x16xf32> to vector<16xf32>
    %12 = vector.shape_cast %11 : vector<16xf32> to vector<16x1xf32>
    %c0_8 = arith.constant 0 : index
    %c0_9 = arith.constant 0 : index
    %13 = vector.load %arg6[%c0_8, %c0_9] : memref<16x8xbf16, #tpu.memory_space<vmem>>, vector<16x8xbf16>
    %14 = arith.extf %13 : vector<16x8xbf16> to vector<16x8xf32>
    %15 = vector.broadcast %12 : vector<16x1xf32> to vector<16x8xf32>
    %16 = arith.mulf %15, %14 : vector<16x8xf32>
    %c0_10 = arith.constant 0 : index
    %c0_11 = arith.constant 0 : index
    %17 = vector.load %arg7[%c0_10, %c0_11] : memref<2x16xbf16, #tpu.memory_space<vmem>>, vector<2x16xbf16>
    %18 = arith.extf %17 : vector<2x16xbf16> to vector<2x16xf32>
    %cst_12 = arith.constant dense<0.000000e+00> : vector<2x8xf32>
    %19 = tpu.matmul %18, %16, %cst_12 {dimension_numbers = #tpu.dot_dimension_numbers<[1], [0], [0], [1], [0, 0, 1, 1], [], []>} : vector<2x16xf32>, vector<16x8xf32>, vector<2x8xf32> -> vector<2x8xf32>
    %20 = tpu.iota {dimensions = array<i32: 1>} : vector<2x8xi32>
    %c0_13 = arith.constant 0 : index
    %c0_14 = arith.constant 0 : index
    %21 = vector.load %arg2[%c0_13, %c0_14] : memref<2x1xi32, #tpu.memory_space<vmem>>, vector<2x1xi32>
    %22 = vector.broadcast %21 : vector<2x1xi32> to vector<2x8xi32>
    %23 = arith.cmpi sge, %20, %22 : vector<2x8xi32>
    %cst_15 = arith.constant 0xFF800000 : f32
    %24 = vector.broadcast %cst_15 : f32 to vector<2x8xf32>
    %25 = arith.select %23, %24, %19 : vector<2x8xi1>, vector<2x8xf32>
    %cst_16 = arith.constant dense<0xFF800000> : vector<2xf32>
    %26 = vector.multi_reduction <maximumf>, %25, %cst_16 [1] : vector<2x8xf32> to vector<2xf32>
    %27 = vector.shape_cast %26 : vector<2xf32> to vector<2x1xf32>
    %28 = vector.broadcast %27 : vector<2x1xf32> to vector<2x8xf32>
    %29 = arith.subf %25, %28 : vector<2x8xf32>
    %30 = math.exp %29 : vector<2x8xf32>
    %cst_17 = arith.constant dense<0.000000e+00> : vector<2xf32>
    %31 = vector.multi_reduction <add>, %30, %cst_17 [1] : vector<2x8xf32> to vector<2xf32>
    %32 = vector.shape_cast %31 : vector<2xf32> to vector<2x1xf32>
    %33 = tpu.reciprocal %32 : vector<2x1xf32> -> vector<2x1xf32>
    %34 = vector.broadcast %33 : vector<2x1xf32> to vector<2x8xf32>
    %35 = arith.mulf %30, %34 : vector<2x8xf32>
    %c0_18 = arith.constant 0 : index
    %c0_19 = arith.constant 0 : index
    %36 = vector.load %arg8[%c0_18, %c0_19] : memref<2x8xf32, #tpu.memory_space<vmem>>, vector<2x8xf32>
    tpu.vector_store %arg8[%c0_18, %c0_19], %35 {strides = array<i32>} : memref<2x8xf32, #tpu.memory_space<vmem>>, vector<2x8xf32>,
    return
  }
  func.func @transform_0(%arg0: i32) -> (i32, i32) {
    %c0_i32 = arith.constant 0 : i32
    %c0_i32_0 = arith.constant 0 : i32
    return %arg0, %c0_i32 : i32, i32
  }
  func.func @transform_1(%arg0: i32) -> (i32, i32) {
    %c0_i32 = arith.constant 0 : i32
    %c0_i32_0 = arith.constant 0 : i32
    return %arg0, %c0_i32 : i32, i32
  }
  func.func @transform_2(%arg0: i32) -> (i32, i32) {
    %c0_i32 = arith.constant 0 : i32
    %c0_i32_0 = arith.constant 0 : i32
    %c0_i32_1 = arith.constant 0 : i32
    return %c0_i32, %c0_i32_0 : i32, i32
  }
  func.func @transform_3(%arg0: i32) -> (i32, i32) {
    %c0_i32 = arith.constant 0 : i32
    %c0_i32_0 = arith.constant 0 : i32
    %c0_i32_1 = arith.constant 0 : i32
    return %c0_i32, %c0_i32_0 : i32, i32
  }
  func.func @transform_4(%arg0: i32) -> (i32, i32) {
    %c0_i32 = arith.constant 0 : i32
    %c0_i32_0 = arith.constant 0 : i32
    %c0_i32_1 = arith.constant 0 : i32
    return %c0_i32, %c0_i32_0 : i32, i32
  }
  func.func @transform_5(%arg0: i32) -> (i32, i32) {
    %c0_i32 = arith.constant 0 : i32
    %c0_i32_0 = arith.constant 0 : i32
    %c0_i32_1 = arith.constant 0 : i32
    return %c0_i32, %c0_i32_0 : i32, i32
  }
  func.func @transform_6(%arg0: i32) -> (i32, i32) {
    %c0_i32 = arith.constant 0 : i32
    %c0_i32_0 = arith.constant 0 : i32
    %c0_i32_1 = arith.constant 0 : i32
    return %c0_i32, %c0_i32_0 : i32, i32
  }
  func.func @transform_7(%arg0: i32) -> (i32, i32) {
    %c0_i32 = arith.constant 0 : i32
    %c0_i32_0 = arith.constant 0 : i32
    return %arg0, %c0_i32 : i32, i32
  }
}

module attributes {stable_mosaic.version = 11 : i64} {
  func.func @attention_kernel(%arg0: i32, %arg1: memref<16x32xf32, #tpu.memory_space<vmem>>, %arg2: memref<2x1xi32, #tpu.memory_space<vmem>>, %arg3: memref<32x16xbf16, #tpu.memory_space<vmem>>, %arg4: memref<1x16xf32, #tpu.memory_space<vmem>>, %arg5: memref<1x16xf32, #tpu.memory_space<vmem>>, %arg6: memref<16x8xbf16, #tpu.memory_space<vmem>>, %arg7: memref<2x16xbf16, #tpu.memory_space<vmem>>, %arg8: memref<2x8xf32, #tpu.memory_space<vmem>>) attributes {dimension_semantics = [#tpu.dimension_semantics<parallel>], iteration_bounds = array<i64: 1>, scalar_prefetch = 0 : i64, scratch_operands = 0 : i64, tpu.core_type = #tpu.core_type<tc>, window_params = [{transform_indices = @transform_0, window_bounds = array<i64: 16, 32>}, {transform_indices = @transform_1, window_bounds = array<i64: 2, 1>}, {pipeline_mode = #tpu.pipeline_mode<synchronous>, transform_indices = @transform_2, window_bounds = array<i64: 32, 16>}, {pipeline_mode = #tpu.pipeline_mode<synchronous>, transform_indices = @transform_3, window_bounds = array<i64: 1, 16>}, {pipeline_mode = #tpu.pipeline_mode<synchronous>, transform_indices = @transform_4, window_bounds = array<i64: 1, 16>}, {pipeline_mode = #tpu.pipeline_mode<synchronous>, transform_indices = @transform_5, window_bounds = array<i64: 16, 8>}, {pipeline_mode = #tpu.pipeline_mode<synchronous>, transform_indices = @transform_6, window_bounds = array<i64: 2, 16>}, {transform_indices = @transform_7, window_bounds = array<i64: 2, 8>}]} {
    %c0 = arith.constant 0 : index
    %c0_0 = arith.constant 0 : index
    %0 = vector.load %arg1[%c0, %c0_0] : memref<16x32xf32, #tpu.memory_space<vmem>>, vector<16x32xf32>
    %1 = arith.truncf %0 : vector<16x32xf32> to vector<16x32xbf16>
    %c0_1 = arith.constant 0 : index
    %c0_2 = arith.constant 0 : index
    %2 = vector.load %arg3[%c0_1, %c0_2] : memref<32x16xbf16, #tpu.memory_space<vmem>>, vector<32x16xbf16>
    %cst = arith.constant dense<0.000000e+00> : vector<16x16xf32>
    %3 = tpu.matmul %1, %2, %cst {dimension_numbers = #tpu.dot_dimension_numbers<[1], [0], [0], [1], [0, 0, 1, 1], [], []>} : vector<16x32xbf16>, vector<32x16xbf16>, vector<16x16xf32> -> vector<16x16xf32>
    %c0_3 = arith.constant 0 : index
    %c0_4 = arith.constant 0 : index
    %4 = vector.load %arg4[%c0_3, %c0_4] : memref<1x16xf32, #tpu.memory_space<vmem>>, vector<1x16xf32>
    %5 = vector.broadcast %4 : vector<1x16xf32> to vector<16x16xf32>
    %6 = arith.addf %3, %5 : vector<16x16xf32>
    %7 = math.tanh %6 : vector<16x16xf32>
    %c0_5 = arith.constant 0 : index
    %c0_6 = arith.constant 0 : index
    %8 = vector.load %arg5[%c0_5, %c0_6] : memref<1x16xf32, #tpu.memory_space<vmem>>, vector<1x16xf32>
    %9 = vector.broadcast %8 : vector<1x16xf32> to vector<16x16xf32>
    %10 = arith.mulf %7, %9 : vector<16x16xf32>
    %cst_7 = arith.constant dense<0.000000e+00> : vector<16xf32>
    %11 = vector.multi_reduction <add>, %10, %cst_7 [1] : vector<16x16xf32> to vector<16xf32>
    %12 = vector.shape_cast %11 : vector<16xf32> to vector<16x1xf32>
    %c0_8 = arith.constant 0 : index
    %c0_9 = arith.constant 0 : index
    %13 = vector.load %arg6[%c0_8, %c0_9] : memref<16x8xbf16, #tpu.memory_space<vmem>>, vector<16x8xbf16>
    %14 = arith.extf %13 : vector<16x8xbf16> to vector<16x8xf32>
    %15 = vector.broadcast %12 : vector<16x1xf32> to vector<16x8xf32>
    %16 = arith.mulf %15, %14 : vector<16x8xf32>
    %c0_10 = arith.constant 0 : index
    %c0_11 = arith.constant 0 : index
    %17 = vector.load %arg7[%c0_10, %c0_11] : memref<2x16xbf16, #tpu.memory_space<vmem>>, vector<2x16xbf16>
    %18 = arith.extf %17 : vector<2x16xbf16> to vector<2x16xf32>
    %cst_12 = arith.constant dense<0.000000e+00> : vector<2x8xf32>
    %19 = tpu.matmul %18, %16, %cst_12 {dimension_numbers = #tpu.dot_dimension_numbers<[1], [0], [0], [1], [0, 0, 1, 1], [], []>} : vector<2x16xf32>, vector<16x8xf32>, vector<2x8xf32> -> vector<2x8xf32>
    %20 = tpu.iota {dimensions = array<i32: 1>} : vector<2x8xi32>
    %c0_13 = arith.constant 0 : index
    %c0_14 = arith.constant 0 : index
    %21 = vector.load %arg2[%c0_13, %c0_14] : memref<2x1xi32, #tpu.memory_space<vmem>>, vector<2x1xi32>
    %22 = vector.broadcast %21 : vector<2x1xi32> to vector<2x8xi32>
    %23 = arith.cmpi sge, %20, %22 : vector<2x8xi32>
    %cst_15 = arith.constant 0xFF800000 : f32
    %24 = vector.broadcast %cst_15 : f32 to vector<2x8xf32>
    %25 = arith.select %23, %24, %19 : vector<2x8xi1>, vector<2x8xf32>
    %cst_16 = arith.constant dense<0xFF800000> : vector<2xf32>
    %26 = vector.multi_reduction <maximumf>, %25, %cst_16 [1] : vector<2x8xf32> to vector<2xf32>
    %27 = vector.shape_cast %26 : vector<2xf32> to vector<2x1xf32>
    %28 = vector.broadcast %27 : vector<2x1xf32> to vector<2x8xf32>
    %29 = arith.subf %25, %28 : vector<2x8xf32>
    %30 = math.exp %29 : vector<2x8xf32>
    %cst_17 = arith.constant dense<0.000000e+00> : vector<2xf32>
    %31 = vector.multi_reduction <add>, %30, %cst_17 [1] : vector<2x8xf32> to vector<2xf32>
    %32 = vector.shape_cast %31 : vector<2xf32> to vector<2x1xf32>
    %33 = tpu.reciprocal %32 : vector<2x1xf32> -> vector<2x1xf32>
    %34 = vector.broadcast %33 : vector<2x1xf32> to vector<2x8xf32>
    %35 = arith.mulf %30, %34 : vector<2x8xf32>
    %c0_18 = arith.constant 0 : index
    %c0_19 = arith.constant 0 : index
    %36 = vector.load %arg8[%c0_18, %c0_19] : memref<2x8xf32, #tpu.memory_space<vmem>>, vector<2x8xf32>
    tpu.vector_store %arg8[%c0_18, %c0_19], %35 {strides = array<i32>} : memref<2x8xf32, #tpu.memory_space<vmem>>, vector<2x8xf32>,
    return
  }
  func.func @transform_0(%arg0: i32) -> (i32, i32) {
    %c0_i32 = arith.constant 0 : i32
    %c0_i32_0 = arith.constant 0 : i32
    return %arg0, %c0_i32 : i32, i32
  }
  func.func @transform_1(%arg0: i32) -> (i32, i32) {
    %c0_i32 = arith.constant 0 : i32
    %c0_i32_0 = arith.constant 0 : i32
    return %arg0, %c0_i32 : i32, i32
  }
  func.func @transform_2(%arg0: i32) -> (i32, i32) {
    %c0_i32 = arith.constant 0 : i32
    %c0_i32_0 = arith.constant 0 : i32
    %c0_i32_1 = arith.constant 0 : i32
    return %c0_i32, %c0_i32_0 : i32, i32
  }
  func.func @transform_3(%arg0: i32) -> (i32, i32) {
    %c0_i32 = arith.constant 0 : i32
    %c0_i32_0 = arith.constant 0 : i32
    %c0_i32_1 = arith.constant 0 : i32
    return %c0_i32, %c0_i32_0 : i32, i32
  }
  func.func @transform_4(%arg0: i32) -> (i32, i32) {
    %c0_i32 = arith.constant 0 : i32
    %c0_i32_0 = arith.constant 0 : i32
    %c0_i32_1 = arith.constant 0 : i32
    return %c0_i32, %c0_i32_0 : i32, i32
  }
  func.func @transform_5(%arg0: i32) -> (i32, i32) {
    %c0_i32 = arith.constant 0 : i32
    %c0_i32_0 = arith.constant 0 : i32
    %c0_i32_1 = arith.constant 0 : i32
    return %c0_i32, %c0_i32_0 : i32, i32
  }
  func.func @transform_6(%arg0: i32) -> (i32, i32) {
    %c0_i32 = arith.constant 0 : i32
    %c0_i32_0 = arith.constant 0 : i32
    %c0_i32_1 = arith.constant 0 : i32
    return %c0_i32, %c0_i32_0 : i32, i32
  }
  func.func @transform_7(%arg0: i32) -> (i32, i32) {
    %c0_i32 = arith.constant 0 : i32
    %c0_i32_0 = arith.constant 0 : i32
    return %arg0, %c0_i32 : i32, i32
  }
}

</mosaic_0001>

<llo_original>
// kernel: tpu_custom_call.1
$region0: #{tpu_custom_call.1}
  #allocation0 [shape = 'u32[]', space=smem, size = 0x4, offset = 0x4, fixed_abs, tag = 'smem constant byte address 0x4 - core index']
  #allocation1 [shape = 'u32[144,128]{1,0:T(1,128)}', space=vmem, size = 0x12000, scoped, tag = 'internal scratch']
  %s0 = inlined_call_operand.vmem [shape: f32[16,32], index: 0, kind: input, shape index: {}]
  %s1 = inlined_call_operand.vmem [shape: s32[2,1], index: 1, kind: input, shape index: {}]
  %s2 = inlined_call_operand.vmem [shape: bf16[32,16], index: 2, kind: input, shape index: {}]
  %s3 = inlined_call_operand.vmem [shape: f32[1,16], index: 3, kind: input, shape index: {}]
  %s4 = inlined_call_operand.vmem [shape: f32[1,16], index: 4, kind: input, shape index: {}]
  %s5 = inlined_call_operand.vmem [shape: bf16[16,8], index: 5, kind: input, shape index: {}]
  %s6 = inlined_call_operand.vmem [shape: bf16[2,16], index: 6, kind: input, shape index: {}]
  %s7 = inlined_call_operand.hbm [shape: f32[2,8], index: 7, kind: output, shape index: {}]
  %s8 = sld [smem:[#allocation0]]
  $region38: #{tpu_custom_call.1} parent=0
    _
  %s10 = ssub.s32 1, %s8
  %s11 = scalar_select 0, %s10, %s8
  $region1: #{tpu_custom_call.1} parent=0
    #allocation2 [shape = 'u8[1024]{0}', space=vmem, size = 0x400, scoped, tag = 'output window, operand 0, single buffered']
    #allocation3 [shape = 's32[1]{0}', space=sflag, size = 0x4, scoped, tag = 'scoped memory for tpu_custom_call.1']
    %12 = vsyncpa [#allocation3], 0
    // Predicated region
    $region2: #{tpu_custom_call.1} parent=1 // pred_check
      _
    $region3: #{tpu_custom_call.1} parent=1 // pred_check_branch
      %14 = sbr.rel (0) target = $region5
    $region4: #{tpu_custom_call.1} parent=1 // pred_region
      _
    $region5: #{tpu_custom_call.1} parent=1 // pred_fallthru
      _
    // Predicated region
    $region6: #{tpu_custom_call.1} parent=1 // pred_check
      _
    $region7: #{tpu_custom_call.1} parent=1 // pred_check_branch
      %16 = sbr.rel (0) target = $region9
    $region8: #{tpu_custom_call.1} parent=1 // pred_region
      _
    $region9: #{tpu_custom_call.1} parent=1 // pred_fallthru
      _
    // Predicated region
    $region10: #{tpu_custom_call.1} parent=1 // pred_check
      _
    $region11: #{tpu_custom_call.1} parent=1 // pred_check_branch
      %18 = sbr.rel (0) target = $region13
    $region12: #{tpu_custom_call.1} parent=1 // pred_region
      _
    $region13: #{tpu_custom_call.1} parent=1 // pred_fallthru
      _
    // Predicated region
    $region14: #{tpu_custom_call.1} parent=1 // pred_check
      _
    $region15: #{tpu_custom_call.1} parent=1 // pred_check_branch
      %20 = sbr.rel (0) target = $region17
    $region16: #{tpu_custom_call.1} parent=1 // pred_region
      _
    $region17: #{tpu_custom_call.1} parent=1 // pred_fallthru
      _
    // Predicated region
    $region18: #{tpu_custom_call.1} parent=1 // pred_check
      _
    $region19: #{tpu_custom_call.1} parent=1 // pred_check_branch
      %22 = sbr.rel (0) target = $region21
    $region20: #{tpu_custom_call.1} parent=1 // pred_region
      _
    $region21: #{tpu_custom_call.1} parent=1 // pred_fallthru
      _
    // Predicated region
    $region22: #{tpu_custom_call.1} parent=1 // pred_check
      _
    $region23: #{tpu_custom_call.1} parent=1 // pred_check_branch
      %24 = sbr.rel (0) target = $region25
    $region24: #{tpu_custom_call.1} parent=1 // pred_region
      _
    $region25: #{tpu_custom_call.1} parent=1 // pred_fallthru
      _
    // Predicated region
    $region26: #{tpu_custom_call.1} parent=1 // pred_check
      _
    $region27: #{tpu_custom_call.1} parent=1 // pred_check_branch
      %26 = sbr.rel (0) target = $region29
    $region28: #{tpu_custom_call.1} parent=1 // pred_region
      _
    $region29: #{tpu_custom_call.1} parent=1 // pred_fallthru
      _
    %v28 = vld [vmem:[%s0] sm:$0xff]
    %v29 = vld [vmem:[%s0 + $0x8] sm:$0xff]
    %v30 = vpack.c.bf16 %v29, %v28
    %v31 = vld [vmem:[%s2] sm:$0xf]
    %v32 = vld [vmem:[%s2 + $0x4] sm:$0xf]
    %v33 = vld [vmem:[%s2 + $0x8] sm:$0xf]
    %v34 = vld [vmem:[%s2 + $0xc] sm:$0xf]
    %v35 = vld [vmem:[%s3] sm:$0x1]
    %v37 = vlaneseq
    %v38 = vshrl.u32 %v37, 7
    %v39 = vsub.s32 0, %v38
    %v40 = vrot.slane %v35, %v39
    %v46 = vunpack.c.l.b16 %v31
    %v47 = vunpack.c.l.b16 %v32
    %v48 = vunpack.c.l.b16 %v33
    %v49 = vunpack.c.l.b16 %v34
    %v50 = vpack.c.b16 %v47, %v46
    %v51 = vpack.c.b16 %v49, %v48
    %vm54 = vcmask 261120
    %v56 = vsel %vm54, %v30, 0
    %58 = vmatprep.subr.bf16.mxu0 0
    %59 = vmatpush1.bf16.msra.mxu0 %v50
    %60 = vmatprep.subr.bf16.mxu0 0
    %61 = vmatpush1.bf16.msra.mxu0 %v51
    %62 = vmatprep.subr.bf16.mxu0 0
    %63 = vmatpush1.bf16.msra.mxu0 0
    %64 = vmatprep.subr.bf16.mxu0 0
    %65 = vmatpush1.bf16.msra.mxu0 0
    %66 = vmatprep.subr.bf16.mxu0 0
    %67 = vmatpush1.bf16.msra.mxu0 0
    %68 = vmatprep.subr.bf16.mxu0 0
    %69 = vmatpush1.bf16.msra.mxu0 0
    %70 = vmatprep.subr.bf16.mxu0 0
    %71 = vmatpush1.bf16.msra.mxu0 0
    %72 = vmatprep.subr.bf16.mxu0 0
    %73 = vmatpush1.bf16.msra.mxu0 0
    %74 = vmatprep.subr.bf16.mxu0 0
    %75 = vmatpush1.bf16.msra.mxu0 0
    %76 = vmatprep.subr.bf16.mxu0 0
    %77 = vmatpush1.bf16.msra.mxu0 0
    %78 = vmatprep.subr.bf16.mxu0 0
    %79 = vmatpush1.bf16.msra.mxu0 0
    %80 = vmatprep.subr.bf16.mxu0 0
    %81 = vmatpush1.bf16.msra.mxu0 0
    %82 = vmatprep.subr.bf16.mxu0 0
    %83 = vmatpush1.bf16.msra.mxu0 0
    %84 = vmatprep.subr.bf16.mxu0 0
    %85 = vmatpush1.bf16.msra.mxu0 0
    %86 = vmatprep.subr.bf16.mxu0 0
    %87 = vmatpush1.bf16.msra.mxu0 0
    %88 = vmatprep.subr.bf16.mxu0 0
    %89 = vmatpush1.bf16.msra.mxu0 0
    %90 = vmatprep.mubr.bf16.mxu0 0
    %91 = vmatmul.mubr.bf16.gmra.mrb[0].mxu0 %v56
    %v92 = vpop.f32.mrb[0].mxu0
    %v93 = vadd.f32 %v40, %v92
    %v94 = vpop.f32.mrb[0].mxu0
    %v95 = vpop.f32.mrb[0].mxu0
    %v96 = vadd.f32 %v40, %v95
    %v97 = vpop.f32.mrb[0].mxu0
    %98 = vdwg.mxu0
    %v99 = vtanh.pop %v93
    %v100 = vtanh.pop %v96
    %v101 = vld [vmem:[%s4] sm:$0x1]
    %v103 = vlaneseq
    %v104 = vshrl.u32 %v103, 7
    %v105 = vsub.s32 0, %v104
    %v106 = vrot.slane %v101, %v105
    %v108 = vmul.f32 %v99, %v106
    %v109 = vmul.f32 %v100, %v106
    %vm110 = vcmask 130048
    %v111 = vsel %vm110, %v108, 0.0
    %112 = vadd.xlane.f32.xlu0 %v111
    %v113 = vpop.xlane.xlu0 %112
    %v114 = vsel %vm110, %v109, 0.0
    %115 = vadd.xlane.f32.xlu0 %v114
    %v116 = vpop.xlane.xlu0 %115
    %v117 = vld [vmem:[%s5] sm:$0xf]
    %v118 = vld [vmem:[%s5 + $0x4] sm:$0xf]
    %v119 = vunpack.c.l.bf16 %v117
    %v120 = vunpack.c.l.bf16 %v118
    %v121 = vmul.f32 %v113, %v119
    %v122 = vmul.f32 %v116, %v120
    %v123 = vld [vmem:[%s6] sm:$0x1]
    %v124 = vunpack.c.l.bf16 %v123
    %v126 = vsel %vm110, %v124, 0
    %128 = vmatprep.subr.mxu0 0.0
    %129 = vmatpush1.msra.mxu0 %v121
    %130 = vmatprep.subr.mxu0 0.0
    %131 = vmatpush1.msra.mxu0 %v122
    %132 = vmatprep.subr.mxu0 0.0
    %133 = vmatpush1.msra.mxu0 0.0
    %134 = vmatprep.subr.mxu0 0.0
    %135 = vmatpush1.msra.mxu0 0.0
    %136 = vmatprep.subr.mxu0 0.0
    %137 = vmatpush1.msra.mxu0 0.0
    %138 = vmatprep.subr.mxu0 0.0
    %139 = vmatpush1.msra.mxu0 0.0
    %140 = vmatprep.subr.mxu0 0.0
    %141 = vmatpush1.msra.mxu0 0.0
    %142 = vmatprep.subr.mxu0 0.0
    %143 = vmatpush1.msra.mxu0 0.0
    %144 = vmatprep.subr.mxu0 0.0
    %145 = vmatpush1.msra.mxu0 0.0
    %146 = vmatprep.subr.mxu0 0.0
    %147 = vmatpush1.msra.mxu0 0.0
    %148 = vmatprep.subr.mxu0 0.0
    %149 = vmatpush1.msra.mxu0 0.0
    %150 = vmatprep.subr.mxu0 0.0
    %151 = vmatpush1.msra.mxu0 0.0
    %152 = vmatprep.subr.mxu0 0.0
    %153 = vmatpush1.msra.mxu0 0.0
    %154 = vmatprep.subr.mxu0 0.0
    %155 = vmatpush1.msra.mxu0 0.0
    %156 = vmatprep.subr.mxu0 0.0
    %157 = vmatpush1.msra.mxu0 0.0
    %158 = vmatprep.subr.mxu0 0.0
    %159 = vmatpush1.msra.mxu0 0.0
    %160 = vmatprep.subr.mxu0 0.0
    %161 = vmatpush1.msra.mxu0 0.0
    %162 = vmatprep.subr.mxu0 0.0
    %163 = vmatpush1.msra.mxu0 0.0
    %164 = vmatprep.subr.mxu0 0.0
    %165 = vmatpush1.msra.mxu0 0.0
    %166 = vmatprep.subr.mxu0 0.0
    %167 = vmatpush1.msra.mxu0 0.0
    %168 = vmatprep.subr.mxu0 0.0
    %169 = vmatpush1.msra.mxu0 0.0
    %170 = vmatprep.subr.mxu0 0.0
    %171 = vmatpush1.msra.mxu0 0.0
    %172 = vmatprep.subr.mxu0 0.0
    %173 = vmatpush1.msra.mxu0 0.0
    %174 = vmatprep.subr.mxu0 0.0
    %175 = vmatpush1.msra.mxu0 0.0
    %176 = vmatprep.subr.mxu0 0.0
    %177 = vmatpush1.msra.mxu0 0.0
    %178 = vmatprep.subr.mxu0 0.0
    %179 = vmatpush1.msra.mxu0 0.0
    %180 = vmatprep.subr.mxu0 0.0
    %181 = vmatpush1.msra.mxu0 0.0
    %182 = vmatprep.subr.mxu0 0.0
    %183 = vmatpush1.msra.mxu0 0.0
    %184 = vmatprep.subr.mxu0 0.0
    %185 = vmatpush1.msra.mxu0 0.0
    %186 = vmatprep.subr.mxu0 0.0
    %187 = vmatpush1.msra.mxu0 0.0
    %188 = vmatprep.subr.mxu0 0.0
    %189 = vmatpush1.msra.mxu0 0.0
    %190 = vmatprep.subr.mxu0 0.0
    %191 = vmatpush1.msra.mxu0 0.0
    %192 = vmatprep.mubr.f32.mxu0 0.0
    %193 = vmatmul.mubr.f32.gmra.mrb[0].mxu0 %v126
    %v194 = vpop.f32.mrb[0].mxu0
    %v195 = vadd.f32 0.0, %v194
    %v196 = vpop.f32.mrb[0].mxu0
    %197 = vdwg.mxu0
    %v198 = vlaneseq
    %v199 = vand.u32 %v198, 127
    %v200 = vld [vmem:[%s1] sm:$0x3]
    %201 = vset.pattern.permute.xlu0 0
    %202 = vperm.xlu0 %201, %v200
    %v203 = vpop.permute.xlu0 %202
    %vm204 = vcmp.ge.s32.totalorder %v199, %v203
    %v205 = vsel %vm204, -inf, %v195
    %vm206 = vcmask 58368
    %v207 = vsel %vm206, %v205, -inf
    %208 = vmax.xlane.f32.xlu0 %v207
    %v209 = vpop.xlane.xlu0 %208
    %v210 = vsub.f32 %v205, %v209
    %v211 = vmul.f32 %v210, 1.442695
    %v212 = vpow.pop %v211
    %v213 = vsel %vm206, %v212, 0.0
    %214 = vadd.xlane.f32.xlu0 %v213
    %v215 = vpop.xlane.xlu0 %214
    %v216 = vrcp.pop %v215
    %v217 = vmul.f32 %v212, %v216
    %218 = vst.msk [vmem:[#allocation2] sm:$0x3] %vm206, %v217
    // Predicated region
    $region30: #{tpu_custom_call.1} parent=1 // pred_check
      _
    $region31: #{tpu_custom_call.1} parent=1 // pred_check_branch
      %220 = sbr.rel (0) target = $region33
    $region32: #{tpu_custom_call.1} parent=1 // pred_region
      %s222 = ssub.s32 32, 32
      %223 = vsyncadd [#allocation3], %s222
      %s225 = sshll.u32 [#allocation2], 4
      %s226 = int_to_ptr.vmem [resolvable:$true] %s225
      %228 = dma.vmem_to_hbm [thread:$0]  %s226, 32, %s7, [#allocation3]
    $region33: #{tpu_custom_call.1} parent=1 // pred_fallthru
      _
    // Predicated region
    $region34: #{tpu_custom_call.1} parent=1 // pred_check
      _
    $region35: #{tpu_custom_call.1} parent=1 // pred_check_branch
      %230 = sbr.rel (0) target = $region37
    $region36: #{tpu_custom_call.1} parent=1 // pred_region
      %231 = dma.done [#allocation3], 32
    $region37: #{tpu_custom_call.1} parent=1 // pred_fallthru
      _
    %232 = vsyncpa [#allocation3], 1

// kernel: tpu_custom_call.1
$region0: #{tpu_custom_call.1}
  #allocation0 [shape = 'u32[]', space=smem, size = 0x4, offset = 0x4, fixed_abs, tag = 'smem constant byte address 0x4 - core index']
  #allocation1 [shape = 'u32[144,128]{1,0:T(1,128)}', space=vmem, size = 0x12000, scoped, tag = 'internal scratch']
  %s0 = inlined_call_operand.vmem [shape: f32[16,32], index: 0, kind: input, shape index: {}]
  %s1 = inlined_call_operand.vmem [shape: s32[2,1], index: 1, kind: input, shape index: {}]
  %s2 = inlined_call_operand.vmem [shape: bf16[32,16], index: 2, kind: input, shape index: {}]
  %s3 = inlined_call_operand.vmem [shape: f32[1,16], index: 3, kind: input, shape index: {}]
  %s4 = inlined_call_operand.vmem [shape: f32[1,16], index: 4, kind: input, shape index: {}]
  %s5 = inlined_call_operand.vmem [shape: bf16[16,8], index: 5, kind: input, shape index: {}]
  %s6 = inlined_call_operand.vmem [shape: bf16[2,16], index: 6, kind: input, shape index: {}]
  %s7 = inlined_call_operand.hbm [shape: f32[2,8], index: 7, kind: output, shape index: {}]
  %s8 = sld [smem:[#allocation0]]
  $region38: #{tpu_custom_call.1} parent=0
    _
  %s10 = ssub.s32 1, %s8
  %s11 = scalar_select 0, %s10, %s8
  $region1: #{tpu_custom_call.1} parent=0
    #allocation2 [shape = 'u8[1024]{0}', space=vmem, size = 0x400, scoped, tag = 'output window, operand 0, single buffered']
    #allocation3 [shape = 's32[1]{0}', space=sflag, size = 0x4, scoped, tag = 'scoped memory for tpu_custom_call.1']
    %12 = vsyncpa [#allocation3], 0
    // Predicated region
    $region2: #{tpu_custom_call.1} parent=1 // pred_check
      _
    $region3: #{tpu_custom_call.1} parent=1 // pred_check_branch
      %14 = sbr.rel (0) target = $region5
    $region4: #{tpu_custom_call.1} parent=1 // pred_region
      _
    $region5: #{tpu_custom_call.1} parent=1 // pred_fallthru
      _
    // Predicated region
    $region6: #{tpu_custom_call.1} parent=1 // pred_check
      _
    $region7: #{tpu_custom_call.1} parent=1 // pred_check_branch
      %16 = sbr.rel (0) target = $region9
    $region8: #{tpu_custom_call.1} parent=1 // pred_region
      _
    $region9: #{tpu_custom_call.1} parent=1 // pred_fallthru
      _
    // Predicated region
    $region10: #{tpu_custom_call.1} parent=1 // pred_check
      _
    $region11: #{tpu_custom_call.1} parent=1 // pred_check_branch
      %18 = sbr.rel (0) target = $region13
    $region12: #{tpu_custom_call.1} parent=1 // pred_region
      _
    $region13: #{tpu_custom_call.1} parent=1 // pred_fallthru
      _
    // Predicated region
    $region14: #{tpu_custom_call.1} parent=1 // pred_check
      _
    $region15: #{tpu_custom_call.1} parent=1 // pred_check_branch
      %20 = sbr.rel (0) target = $region17
    $region16: #{tpu_custom_call.1} parent=1 // pred_region
      _
    $region17: #{tpu_custom_call.1} parent=1 // pred_fallthru
      _
    // Predicated region
    $region18: #{tpu_custom_call.1} parent=1 // pred_check
      _
    $region19: #{tpu_custom_call.1} parent=1 // pred_check_branch
      %22 = sbr.rel (0) target = $region21
    $region20: #{tpu_custom_call.1} parent=1 // pred_region
      _
    $region21: #{tpu_custom_call.1} parent=1 // pred_fallthru
      _
    // Predicated region
    $region22: #{tpu_custom_call.1} parent=1 // pred_check
      _
    $region23: #{tpu_custom_call.1} parent=1 // pred_check_branch
      %24 = sbr.rel (0) target = $region25
    $region24: #{tpu_custom_call.1} parent=1 // pred_region
      _
    $region25: #{tpu_custom_call.1} parent=1 // pred_fallthru
      _
    // Predicated region
    $region26: #{tpu_custom_call.1} parent=1 // pred_check
      _
    $region27: #{tpu_custom_call.1} parent=1 // pred_check_branch
      %26 = sbr.rel (0) target = $region29
    $region28: #{tpu_custom_call.1} parent=1 // pred_region
      _
    $region29: #{tpu_custom_call.1} parent=1 // pred_fallthru
      _
    %v28 = vld [vmem:[%s0] sm:$0xff]
    %v29 = vld [vmem:[%s0 + $0x8] sm:$0xff]
    %v30 = vpack.c.bf16 %v29, %v28
    %v31 = vld [vmem:[%s2] sm:$0xf]
    %v32 = vld [vmem:[%s2 + $0x4] sm:$0xf]
    %v33 = vld [vmem:[%s2 + $0x8] sm:$0xf]
    %v34 = vld [vmem:[%s2 + $0xc] sm:$0xf]
    %v35 = vld [vmem:[%s3] sm:$0x1]
    %v37 = vlaneseq
    %v38 = vshrl.u32 %v37, 7
    %v39 = vsub.s32 0, %v38
    %v40 = vrot.slane %v35, %v39
    %v46 = vunpack.c.l.b16 %v31
    %v47 = vunpack.c.l.b16 %v32
    %v48 = vunpack.c.l.b16 %v33
    %v49 = vunpack.c.l.b16 %v34
    %v50 = vpack.c.b16 %v47, %v46
    %v51 = vpack.c.b16 %v49, %v48
    %vm54 = vcmask 261120
    %v56 = vsel %vm54, %v30, 0
    %58 = vmatprep.subr.bf16.mxu0 0
    %59 = vmatpush1.bf16.msra.mxu0 %v50
    %60 = vmatprep.subr.bf16.mxu0 0
    %61 = vmatpush1.bf16.msra.mxu0 %v51
    %62 = vmatprep.subr.bf16.mxu0 0
    %63 = vmatpush1.bf16.msra.mxu0 0
    %64 = vmatprep.subr.bf16.mxu0 0
    %65 = vmatpush1.bf16.msra.mxu0 0
    %66 = vmatprep.subr.bf16.mxu0 0
    %67 = vmatpush1.bf16.msra.mxu0 0
    %68 = vmatprep.subr.bf16.mxu0 0
    %69 = vmatpush1.bf16.msra.mxu0 0
    %70 = vmatprep.subr.bf16.mxu0 0
    %71 = vmatpush1.bf16.msra.mxu0 0
    %72 = vmatprep.subr.bf16.mxu0 0
    %73 = vmatpush1.bf16.msra.mxu0 0
    %74 = vmatprep.subr.bf16.mxu0 0
    %75 = vmatpush1.bf16.msra.mxu0 0
    %76 = vmatprep.subr.bf16.mxu0 0
    %77 = vmatpush1.bf16.msra.mxu0 0
    %78 = vmatprep.subr.bf16.mxu0 0
    %79 = vmatpush1.bf16.msra.mxu0 0
    %80 = vmatprep.subr.bf16.mxu0 0
    %81 = vmatpush1.bf16.msra.mxu0 0
    %82 = vmatprep.subr.bf16.mxu0 0
    %83 = vmatpush1.bf16.msra.mxu0 0
    %84 = vmatprep.subr.bf16.mxu0 0
    %85 = vmatpush1.bf16.msra.mxu0 0
    %86 = vmatprep.subr.bf16.mxu0 0
    %87 = vmatpush1.bf16.msra.mxu0 0
    %88 = vmatprep.subr.bf16.mxu0 0
    %89 = vmatpush1.bf16.msra.mxu0 0
    %90 = vmatprep.mubr.bf16.mxu0 0
    %91 = vmatmul.mubr.bf16.gmra.mrb[0].mxu0 %v56
    %v92 = vpop.f32.mrb[0].mxu0
    %v93 = vadd.f32 %v40, %v92
    %v94 = vpop.f32.mrb[0].mxu0
    %v95 = vpop.f32.mrb[0].mxu0
    %v96 = vadd.f32 %v40, %v95
    %v97 = vpop.f32.mrb[0].mxu0
    %98 = vdwg.mxu0
    %v99 = vtanh.pop %v93
    %v100 = vtanh.pop %v96
    %v101 = vld [vmem:[%s4] sm:$0x1]
    %v103 = vlaneseq
    %v104 = vshrl.u32 %v103, 7
    %v105 = vsub.s32 0, %v104
    %v106 = vrot.slane %v101, %v105
    %v108 = vmul.f32 %v99, %v106
    %v109 = vmul.f32 %v100, %v106
    %vm110 = vcmask 130048
    %v111 = vsel %vm110, %v108, 0.0
    %112 = vadd.xlane.f32.xlu0 %v111
    %v113 = vpop.xlane.xlu0 %112
    %v114 = vsel %vm110, %v109, 0.0
    %115 = vadd.xlane.f32.xlu0 %v114
    %v116 = vpop.xlane.xlu0 %115
    %v117 = vld [vmem:[%s5] sm:$0xf]
    %v118 = vld [vmem:[%s5 + $0x4] sm:$0xf]
    %v119 = vunpack.c.l.bf16 %v117
    %v120 = vunpack.c.l.bf16 %v118
    %v121 = vmul.f32 %v113, %v119
    %v122 = vmul.f32 %v116, %v120
    %v123 = vld [vmem:[%s6] sm:$0x1]
    %v124 = vunpack.c.l.bf16 %v123
    %v126 = vsel %vm110, %v124, 0
    %128 = vmatprep.subr.mxu0 0.0
    %129 = vmatpush1.msra.mxu0 %v121
    %130 = vmatprep.subr.mxu0 0.0
    %131 = vmatpush1.msra.mxu0 %v122
    %132 = vmatprep.subr.mxu0 0.0
    %133 = vmatpush1.msra.mxu0 0.0
    %134 = vmatprep.subr.mxu0 0.0
    %135 = vmatpush1.msra.mxu0 0.0
    %136 = vmatprep.subr.mxu0 0.0
    %137 = vmatpush1.msra.mxu0 0.0
    %138 = vmatprep.subr.mxu0 0.0
    %139 = vmatpush1.msra.mxu0 0.0
    %140 = vmatprep.subr.mxu0 0.0
    %141 = vmatpush1.msra.mxu0 0.0
    %142 = vmatprep.subr.mxu0 0.0
    %143 = vmatpush1.msra.mxu0 0.0
    %144 = vmatprep.subr.mxu0 0.0
    %145 = vmatpush1.msra.mxu0 0.0
    %146 = vmatprep.subr.mxu0 0.0
    %147 = vmatpush1.msra.mxu0 0.0
    %148 = vmatprep.subr.mxu0 0.0
    %149 = vmatpush1.msra.mxu0 0.0
    %150 = vmatprep.subr.mxu0 0.0
    %151 = vmatpush1.msra.mxu0 0.0
    %152 = vmatprep.subr.mxu0 0.0
    %153 = vmatpush1.msra.mxu0 0.0
    %154 = vmatprep.subr.mxu0 0.0
    %155 = vmatpush1.msra.mxu0 0.0
    %156 = vmatprep.subr.mxu0 0.0
    %157 = vmatpush1.msra.mxu0 0.0
    %158 = vmatprep.subr.mxu0 0.0
    %159 = vmatpush1.msra.mxu0 0.0
    %160 = vmatprep.subr.mxu0 0.0
    %161 = vmatpush1.msra.mxu0 0.0
    %162 = vmatprep.subr.mxu0 0.0
    %163 = vmatpush1.msra.mxu0 0.0
    %164 = vmatprep.subr.mxu0 0.0
    %165 = vmatpush1.msra.mxu0 0.0
    %166 = vmatprep.subr.mxu0 0.0
    %167 = vmatpush1.msra.mxu0 0.0
    %168 = vmatprep.subr.mxu0 0.0
    %169 = vmatpush1.msra.mxu0 0.0
    %170 = vmatprep.subr.mxu0 0.0
    %171 = vmatpush1.msra.mxu0 0.0
    %172 = vmatprep.subr.mxu0 0.0
    %173 = vmatpush1.msra.mxu0 0.0
    %174 = vmatprep.subr.mxu0 0.0
    %175 = vmatpush1.msra.mxu0 0.0
    %176 = vmatprep.subr.mxu0 0.0
    %177 = vmatpush1.msra.mxu0 0.0
    %178 = vmatprep.subr.mxu0 0.0
    %179 = vmatpush1.msra.mxu0 0.0
    %180 = vmatprep.subr.mxu0 0.0
    %181 = vmatpush1.msra.mxu0 0.0
    %182 = vmatprep.subr.mxu0 0.0
    %183 = vmatpush1.msra.mxu0 0.0
    %184 = vmatprep.subr.mxu0 0.0
    %185 = vmatpush1.msra.mxu0 0.0
    %186 = vmatprep.subr.mxu0 0.0
    %187 = vmatpush1.msra.mxu0 0.0
    %188 = vmatprep.subr.mxu0 0.0
    %189 = vmatpush1.msra.mxu0 0.0
    %190 = vmatprep.subr.mxu0 0.0
    %191 = vmatpush1.msra.mxu0 0.0
    %192 = vmatprep.mubr.f32.mxu0 0.0
    %193 = vmatmul.mubr.f32.gmra.mrb[0].mxu0 %v126
    %v194 = vpop.f32.mrb[0].mxu0
    %v195 = vadd.f32 0.0, %v194
    %v196 = vpop.f32.mrb[0].mxu0
    %197 = vdwg.mxu0
    %v198 = vlaneseq
    %v199 = vand.u32 %v198, 127
    %v200 = vld [vmem:[%s1] sm:$0x3]
    %201 = vset.pattern.permute.xlu0 0
    %202 = vperm.xlu0 %201, %v200
    %v203 = vpop.permute.xlu0 %202
    %vm204 = vcmp.ge.s32.totalorder %v199, %v203
    %v205 = vsel %vm204, -inf, %v195
    %vm206 = vcmask 58368
    %v207 = vsel %vm206, %v205, -inf
    %208 = vmax.xlane.f32.xlu0 %v207
    %v209 = vpop.xlane.xlu0 %208
    %v210 = vsub.f32 %v205, %v209
    %v211 = vmul.f32 %v210, 1.442695
    %v212 = vpow.pop %v211
    %v213 = vsel %vm206, %v212, 0.0
    %214 = vadd.xlane.f32.xlu0 %v213
    %v215 = vpop.xlane.xlu0 %214
    %v216 = vrcp.pop %v215
    %v217 = vmul.f32 %v212, %v216
    %218 = vst.msk [vmem:[#allocation2] sm:$0x3] %vm206, %v217
    // Predicated region
    $region30: #{tpu_custom_call.1} parent=1 // pred_check
      _
    $region31: #{tpu_custom_call.1} parent=1 // pred_check_branch
      %220 = sbr.rel (0) target = $region33
    $region32: #{tpu_custom_call.1} parent=1 // pred_region
      %s222 = ssub.s32 32, 32
      %223 = vsyncadd [#allocation3], %s222
      %s225 = sshll.u32 [#allocation2], 4
      %s226 = int_to_ptr.vmem [resolvable:$true] %s225
      %228 = dma.vmem_to_hbm [thread:$0]  %s226, 32, %s7, [#allocation3]
    $region33: #{tpu_custom_call.1} parent=1 // pred_fallthru
      _
    // Predicated region
    $region34: #{tpu_custom_call.1} parent=1 // pred_check
      _
    $region35: #{tpu_custom_call.1} parent=1 // pred_check_branch
      %230 = sbr.rel (0) target = $region37
    $region36: #{tpu_custom_call.1} parent=1 // pred_region
      %231 = dma.done [#allocation3], 32
    $region37: #{tpu_custom_call.1} parent=1 // pred_fallthru
      _
    %232 = vsyncpa [#allocation3], 1

</llo_original>
